<compile_context>
chip_gen: v6e
topology: v6e:2x2x1
jax: 0.10.0
libtpu: 0.0.40
codegen_flags: <defaults>
</compile_context>

<pallas_src>
import jax
import jax.numpy as jnp
from jax.experimental import pallas as pl
from jax.experimental.pallas import tpu as pltpu

EPS = 1e-6


def _round_up(a, m):
    return (a + m - 1) // m * m


def _fold_lanes_tree(a, n_chunks):
    """(rows, n_chunks*128) -> (rows, 128) via a pairwise tree of VPU adds."""
    parts = [a[:, j * 128:(j + 1) * 128] for j in range(n_chunks)]
    while len(parts) > 1:
        nxt = []
        for k in range(0, len(parts) - 1, 2):
            nxt.append(parts[k] + parts[k + 1])
        if len(parts) % 2:
            nxt.append(parts[-1])
        parts = nxt
    return parts[0]


def _make_sdsc_partial_kernel(n_lane_chunks):
    """Kernel accumulating per-row partial (128-lane) inter/union sums."""

    def kernel(x_ref, y_ref, inter_ref, union_ref):
        t = pl.program_id(1)

        @pl.when(t == 0)
        def _init():
            inter_ref[...] = jnp.zeros_like(inter_ref)
            union_ref[...] = jnp.zeros_like(union_ref)

        x = x_ref[...].astype(jnp.float32)          # (tBC, tT)
        y = y_ref[...].astype(jnp.float32)          # (tBC, tT)

        ax = jnp.abs(x)
        ay = jnp.abs(y)
        # (x*y) > 0 <=> same nonzero sign; zero cases contribute 0 anyway.
        inter = jnp.where((x * y) > 0.0, jnp.minimum(ax, ay), 0.0)
        union = ax + ay

        # Deferred cross-lane reduction: fold tT down to 128 lanes with plain
        # aligned 128-lane VPU adds (no XLU work per tile).
        inter_ref[...] += _fold_lanes_tree(inter, n_lane_chunks)
        union_ref[...] += _fold_lanes_tree(union, n_lane_chunks)

    return kernel


def signal_dice_loss(inputs, targets, eps=EPS):
    """Pallas implementation of SignalDiceLoss(sep=True, eps=1e-6).forward."""
    assert inputs.shape == targets.shape and inputs.ndim == 3
    B, C, T = inputs.shape
    BC = B * C

    # (B, C, T) -> (B*C, T): sublane-dense 2-D view (free layout plumbing).
    x2d = inputs.reshape(BC, T)
    y2d = targets.reshape(BC, T)

    # (8,128)-aligned tiles; cap block at 256 x 4096 f32 = 4 MiB so that
    # 2 inputs x 2 double-buffers (~16 MiB) fits v5e/v6e/v7x scoped VMEM.
    tBC = min(_round_up(BC, 8), 256)
    tT = min(_round_up(T, 128), 4096)
    BCp = _round_up(BC, tBC)
    Tp = _round_up(T, tT)

    if (BCp, Tp) != (BC, T):
        # Zero padding is exact: padded elements add 0 to both sums; padded
        # rows are sliced off before the mean.
        x2d = jnp.pad(x2d, ((0, BCp - BC), (0, Tp - T)))
        y2d = jnp.pad(y2d, ((0, BCp - BC), (0, Tp - T)))

    grid = (BCp // tBC, Tp // tT)

    inter_sums, union_sums = pl.pallas_call(
        _make_sdsc_partial_kernel(tT // 128),
        out_shape=(
            jax.ShapeDtypeStruct((BCp, 128), jnp.float32),
            jax.ShapeDtypeStruct((BCp, 128), jnp.float32),
        ),
        grid=grid,
        in_specs=[
            pl.BlockSpec((tBC, tT), lambda i, t: (i, t)),
            pl.BlockSpec((tBC, tT), lambda i, t: (i, t)),
        ],
        out_specs=(
            pl.BlockSpec((tBC, 128), lambda i, t: (i, 0)),
            pl.BlockSpec((tBC, 128), lambda i, t: (i, 0)),
        ),
        compiler_params=pltpu.CompilerParams(
            dimension_semantics=("parallel", "arbitrary"),
            vmem_limit_bytes=32 * 1024 * 1024,
        ),
    )(x2d, y2d)

    # Tiny finalize in plain JAX: lane reduce per row, drop padded rows,
    # ratio, and the scalar means.
    inter_row = jnp.sum(inter_sums[:BC], axis=-1)            # (BC,)
    union_row = jnp.sum(union_sums[:BC], axis=-1)            # (BC,)
    ratio = (2.0 * inter_row + eps) / (union_row + eps)
    # mean(1 - mean(ratio)) == 1 - mean(ratio)  (outer mean over a scalar)
    return 1.0 - jnp.mean(ratio)


def _reference_loss(inputs, targets, eps=EPS):
    """Pure-JAX reference (mirrors the PyTorch forward, sep=True)."""
    ax, ay = jnp.abs(inputs), jnp.abs(targets)
    same = jnp.sign(inputs) == jnp.sign(targets)
    inter = jnp.where(same, jnp.minimum(ax, ay), 0.0)
    union = ax + ay
    ratio = (2.0 * jnp.sum(inter, axis=2) + eps) / (jnp.sum(union, axis=2) + eps)
    return jnp.mean(1.0 - jnp.mean(ratio))


if __name__ == "__main__":
    key = jax.random.PRNGKey(0)
    k1, k2 = jax.random.split(key)
    B, C, T = 2, 4, 128
    inputs = jax.random.normal(k1, (B, C, T), dtype=jnp.float32)
    targets = jax.random.normal(k2, (B, C, T), dtype=jnp.float32)

    loss = jax.block_until_ready(signal_dice_loss(inputs, targets))
    ref = jax.block_until_ready(_reference_loss(inputs, targets))
    assert jnp.allclose(loss, ref, atol=1e-5, rtol=1e-5), (loss, ref)

    # Second (non-aligned) shape to exercise the padding path.
    B2, C2, T2 = 3, 5, 200
    i2 = jax.random.normal(k1, (B2, C2, T2), dtype=jnp.float32)
    t2 = jax.random.normal(k2, (B2, C2, T2), dtype=jnp.float32)
    loss2 = jax.block_until_ready(signal_dice_loss(i2, t2))
    ref2 = jax.block_until_ready(_reference_loss(i2, t2))
    assert jnp.allclose(loss2, ref2, atol=1e-5, rtol=1e-5), (loss2, ref2)

    print("KERNEL_OK")
</pallas_src>

<mosaic_0001>
module attributes {stable_mosaic.version = 11 : i64} {
  func.func @kernel(%arg0: i32, %arg1: i32, %arg2: memref<8x128xf32, #tpu.memory_space<vmem>>, %arg3: memref<8x128xf32, #tpu.memory_space<vmem>>, %arg4: memref<8x128xf32, #tpu.memory_space<vmem>>, %arg5: memref<8x128xf32, #tpu.memory_space<vmem>>) attributes {dimension_semantics = [#tpu.dimension_semantics<parallel>, #tpu.dimension_semantics<arbitrary>], iteration_bounds = array<i64: 1, 1>, scalar_prefetch = 0 : i64, scratch_operands = 0 : i64, tpu.core_type = #tpu.core_type<tc>, window_params = [{transform_indices = @transform_0, window_bounds = array<i64: 8, 128>}, {transform_indices = @transform_1, window_bounds = array<i64: 8, 128>}, {transform_indices = @transform_2, window_bounds = array<i64: 8, 128>}, {transform_indices = @transform_3, window_bounds = array<i64: 8, 128>}]} {
    %c0_i32 = arith.constant 0 : i32
    %0 = arith.cmpi eq, %arg1, %c0_i32 : i32
    %1 = arith.extui %0 : i1 to i32
    %c0_i32_0 = arith.constant 0 : i32
    %2 = arith.cmpi ne, %1, %c0_i32_0 : i32
    scf.if %2 {
      %cst_13 = arith.constant 0.000000e+00 : f32
      %20 = vector.broadcast %cst_13 : f32 to vector<8x128xf32>
      %c0_14 = arith.constant 0 : index
      %c0_15 = arith.constant 0 : index
      %21 = vector.load %arg4[%c0_14, %c0_15] : memref<8x128xf32, #tpu.memory_space<vmem>>, vector<8x128xf32>
      tpu.vector_store %arg4[%c0_14, %c0_15], %20 {strides = array<i32>} : memref<8x128xf32, #tpu.memory_space<vmem>>, vector<8x128xf32>,
      %cst_16 = arith.constant 0.000000e+00 : f32
      %22 = vector.broadcast %cst_16 : f32 to vector<8x128xf32>
      %c0_17 = arith.constant 0 : index
      %c0_18 = arith.constant 0 : index
      %23 = vector.load %arg5[%c0_17, %c0_18] : memref<8x128xf32, #tpu.memory_space<vmem>>, vector<8x128xf32>
      tpu.vector_store %arg5[%c0_17, %c0_18], %22 {strides = array<i32>} : memref<8x128xf32, #tpu.memory_space<vmem>>, vector<8x128xf32>,
    } else {
    }
    %c0 = arith.constant 0 : index
    %c0_1 = arith.constant 0 : index
    %3 = vector.load %arg2[%c0, %c0_1] : memref<8x128xf32, #tpu.memory_space<vmem>>, vector<8x128xf32>
    %c0_2 = arith.constant 0 : index
    %c0_3 = arith.constant 0 : index
    %4 = vector.load %arg3[%c0_2, %c0_3] : memref<8x128xf32, #tpu.memory_space<vmem>>, vector<8x128xf32>
    %5 = math.absf %3 : vector<8x128xf32>
    %6 = math.absf %4 : vector<8x128xf32>
    %7 = arith.mulf %3, %4 : vector<8x128xf32>
    %cst = arith.constant 0.000000e+00 : f32
    %8 = vector.broadcast %cst : f32 to vector<8x128xf32>
    %9 = arith.cmpf ogt, %7, %8 : vector<8x128xf32>
    %10 = arith.minimumf %5, %6 : vector<8x128xf32>
    %cst_4 = arith.constant 0.000000e+00 : f32
    %11 = vector.broadcast %cst_4 : f32 to vector<8x128xf32>
    %12 = arith.select %9, %10, %11 : vector<8x128xi1>, vector<8x128xf32>
    %13 = arith.addf %5, %6 : vector<8x128xf32>
    %c0_5 = arith.constant 0 : index
    %c0_6 = arith.constant 0 : index
    %14 = vector.load %arg4[%c0_5, %c0_6] : memref<8x128xf32, #tpu.memory_space<vmem>>, vector<8x128xf32>
    %15 = arith.addf %14, %12 : vector<8x128xf32>
    %c0_7 = arith.constant 0 : index
    %c0_8 = arith.constant 0 : index
    %16 = vector.load %arg4[%c0_7, %c0_8] : memref<8x128xf32, #tpu.memory_space<vmem>>, vector<8x128xf32>
    tpu.vector_store %arg4[%c0_7, %c0_8], %15 {strides = array<i32>} : memref<8x128xf32, #tpu.memory_space<vmem>>, vector<8x128xf32>,
    %c0_9 = arith.constant 0 : index
    %c0_10 = arith.constant 0 : index
    %17 = vector.load %arg5[%c0_9, %c0_10] : memref<8x128xf32, #tpu.memory_space<vmem>>, vector<8x128xf32>
    %18 = arith.addf %17, %13 : vector<8x128xf32>
    %c0_11 = arith.constant 0 : index
    %c0_12 = arith.constant 0 : index
    %19 = vector.load %arg5[%c0_11, %c0_12] : memref<8x128xf32, #tpu.memory_space<vmem>>, vector<8x128xf32>
    tpu.vector_store %arg5[%c0_11, %c0_12], %18 {strides = array<i32>} : memref<8x128xf32, #tpu.memory_space<vmem>>, vector<8x128xf32>,
    return
  }
  func.func @transform_0(%arg0: i32, %arg1: i32) -> (i32, i32) {
    %c0_i32 = arith.constant 0 : i32
    return %arg0, %arg1 : i32, i32
  }
  func.func @transform_1(%arg0: i32, %arg1: i32) -> (i32, i32) {
    %c0_i32 = arith.constant 0 : i32
    return %arg0, %arg1 : i32, i32
  }
  func.func @transform_2(%arg0: i32, %arg1: i32) -> (i32, i32) {
    %c0_i32 = arith.constant 0 : i32
    %c0_i32_0 = arith.constant 0 : i32
    return %arg0, %c0_i32 : i32, i32
  }
  func.func @transform_3(%arg0: i32, %arg1: i32) -> (i32, i32) {
    %c0_i32 = arith.constant 0 : i32
    %c0_i32_0 = arith.constant 0 : i32
    return %arg0, %c0_i32 : i32, i32
  }
}

</mosaic_0001>

<llo_original>
// kernel: tpu_custom_call.1
$region0: #{tpu_custom_call.1}
  #allocation0 [shape = 'u32[]', space=smem, size = 0x4, offset = 0x4, fixed_abs, tag = 'smem constant byte address 0x4 - core index']
  #allocation1 [shape = 'u32[144,128]{1,0:T(1,128)}', space=vmem, size = 0x12000, scoped, tag = 'internal scratch']
  %s0 = inlined_call_operand.hbm [shape: f32[8,128], index: 0, kind: input, shape index: {}]
  %s1 = inlined_call_operand.hbm [shape: f32[8,128], index: 1, kind: input, shape index: {}]
  %s2 = inlined_call_operand.hbm [shape: f32[8,128], index: 2, kind: output, shape index: {0}]
  %s3 = inlined_call_operand.hbm [shape: f32[8,128], index: 3, kind: output, shape index: {1}]
  %4 = xla_tuple %s2, %s3
  %s5 = sld [smem:[#allocation0]]
  $region38: #{tpu_custom_call.1} parent=0
    _
  %s7 = ssub.s32 1, %s5
  %s8 = scalar_select 0, %s7, %s5
  $region1: #{tpu_custom_call.1} parent=0
    #allocation2 [shape = 'u8[4096]{0}', space=vmem, size = 0x1000, scoped, tag = 'input window, operand 0, single buffered']
    #allocation3 [shape = 's32[1]{0}', space=sflag, size = 0x4, scoped, tag = 'scoped memory for tpu_custom_call.1']
    #allocation4 [shape = 's32[1]{0}', space=sflag, size = 0x4, scoped, tag = 'scoped memory for tpu_custom_call.1']
    #allocation5 [shape = 'u8[4096]{0}', space=vmem, size = 0x1000, scoped, tag = 'input window, operand 1, single buffered']
    #allocation6 [shape = 's32[1]{0}', space=sflag, size = 0x4, scoped, tag = 'scoped memory for tpu_custom_call.1']
    #allocation7 [shape = 'u8[4096]{0}', space=vmem, size = 0x1000, scoped, tag = 'output window, operand 0, single buffered']
    #allocation8 [shape = 'u8[4096]{0}', space=vmem, size = 0x1000, scoped, tag = 'output window, operand 1, single buffered']
    #allocation9 [shape = 's32[1]{0}', space=sflag, size = 0x4, scoped, tag = 'scoped memory for tpu_custom_call.1']
    %9 = vsyncpa [#allocation3], 0
    %10 = vsyncpa [#allocation6], 0
    %11 = vsyncpa [#allocation4], 0
    %12 = vsyncpa [#allocation9], 0
    // Predicated region
    $region2: #{tpu_custom_call.1} parent=1 // pred_check
      _
    $region3: #{tpu_custom_call.1} parent=1 // pred_check_branch
      %14 = sbr.rel (0) target = $region5
    $region4: #{tpu_custom_call.1} parent=1 // pred_region
      %s16 = ssub.s32 128, 128
      %17 = vsyncadd [#allocation3], %s16
      %s19 = sshll.u32 [#allocation2], 4
      %s20 = int_to_ptr.vmem [resolvable:$true] %s19
      %22 = dma.hbm_to_vmem [thread:$0]  %s0, 128, %s20, [#allocation3]
    $region5: #{tpu_custom_call.1} parent=1 // pred_fallthru
      _
    // Predicated region
    $region6: #{tpu_custom_call.1} parent=1 // pred_check
      _
    $region7: #{tpu_custom_call.1} parent=1 // pred_check_branch
      %24 = sbr.rel (0) target = $region9
    $region8: #{tpu_custom_call.1} parent=1 // pred_region
      %s26 = ssub.s32 128, 128
      %27 = vsyncadd [#allocation6], %s26
      %s29 = sshll.u32 [#allocation5], 4
      %s30 = int_to_ptr.vmem [resolvable:$true] %s29
      %32 = dma.hbm_to_vmem [thread:$0]  %s1, 128, %s30, [#allocation6]
    $region9: #{tpu_custom_call.1} parent=1 // pred_fallthru
      _
    // Predicated region
    $region10: #{tpu_custom_call.1} parent=1 // pred_check
      _
    $region11: #{tpu_custom_call.1} parent=1 // pred_check_branch
      %34 = sbr.rel (0) target = $region13
    $region12: #{tpu_custom_call.1} parent=1 // pred_region
      %35 = dma.done [#allocation3], 128
    $region13: #{tpu_custom_call.1} parent=1 // pred_fallthru
      _
    // Predicated region
    $region14: #{tpu_custom_call.1} parent=1 // pred_check
      _
    $region15: #{tpu_custom_call.1} parent=1 // pred_check_branch
      %37 = sbr.rel (0) target = $region17
    $region16: #{tpu_custom_call.1} parent=1 // pred_region
      %38 = dma.done [#allocation6], 128
    $region17: #{tpu_custom_call.1} parent=1 // pred_fallthru
      _
    %p39 = scmp.eq.s32.totalorder 0, 0
    // Predicated region
    $region18: #{tpu_custom_call.1} parent=1 // pred_check
      %p40 = pneg %p39
    $region19: #{tpu_custom_call.1} parent=1 // pred_check_branch
      %42 = sbr.rel (%p40) target = $region21
    $region20: #{tpu_custom_call.1} parent=1 // pred_region
      %43 = vst [vmem:[#allocation7] sm:$0xff] 0.0
      %44 = vst [vmem:[#allocation8] sm:$0xff] 0.0
    $region21: #{tpu_custom_call.1} parent=1 // pred_fallthru
      _
    %v45 = vld [vmem:[#allocation2] sm:$0xff]
    %v46 = vld [vmem:[#allocation5] sm:$0xff]
    %v47 = vand.u32 2147483647, %v45
    %v48 = vand.u32 2147483647, %v46
    %v49 = vmul.f32 %v45, %v46
    %vm50 = vcmp.gt.f32.partialorder %v49, 0.0
    %v51 = vmin.f32 %v47, %v48
    %v52 = vsel %vm50, %v51, 0.0
    %v53 = vadd.f32 %v47, %v48
    %v54 = vld [vmem:[#allocation7] sm:$0xff]
    %v55 = vadd.f32 %v54, %v52
    %56 = vst [vmem:[#allocation7] sm:$0xff] %v55
    %v57 = vld [vmem:[#allocation8] sm:$0xff]
    %v58 = vadd.f32 %v57, %v53
    %59 = vst [vmem:[#allocation8] sm:$0xff] %v58
    // Predicated region
    $region22: #{tpu_custom_call.1} parent=1 // pred_check
      _
    $region23: #{tpu_custom_call.1} parent=1 // pred_check_branch
      %61 = sbr.rel (0) target = $region25
    $region24: #{tpu_custom_call.1} parent=1 // pred_region
      %s63 = ssub.s32 128, 128
      %64 = vsyncadd [#allocation4], %s63
      %s66 = sshll.u32 [#allocation7], 4
      %s67 = int_to_ptr.vmem [resolvable:$true] %s66
      %69 = dma.vmem_to_hbm [thread:$0]  %s67, 128, %s2, [#allocation4]
    $region25: #{tpu_custom_call.1} parent=1 // pred_fallthru
      _
    // Predicated region
    $region26: #{tpu_custom_call.1} parent=1 // pred_check
      _
    $region27: #{tpu_custom_call.1} parent=1 // pred_check_branch
      %71 = sbr.rel (0) target = $region29
    $region28: #{tpu_custom_call.1} parent=1 // pred_region
      %s73 = ssub.s32 128, 128
      %74 = vsyncadd [#allocation9], %s73
      %s76 = sshll.u32 [#allocation8], 4
      %s77 = int_to_ptr.vmem [resolvable:$true] %s76
      %79 = dma.vmem_to_hbm [thread:$0]  %s77, 128, %s3, [#allocation9]
    $region29: #{tpu_custom_call.1} parent=1 // pred_fallthru
      _
    // Predicated region
    $region30: #{tpu_custom_call.1} parent=1 // pred_check
      _
    $region31: #{tpu_custom_call.1} parent=1 // pred_check_branch
      %81 = sbr.rel (0) target = $region33
    $region32: #{tpu_custom_call.1} parent=1 // pred_region
      %82 = dma.done [#allocation4], 128
    $region33: #{tpu_custom_call.1} parent=1 // pred_fallthru
      _
    // Predicated region
    $region34: #{tpu_custom_call.1} parent=1 // pred_check
      _
    $region35: #{tpu_custom_call.1} parent=1 // pred_check_branch
      %84 = sbr.rel (0) target = $region37
    $region36: #{tpu_custom_call.1} parent=1 // pred_region
      %85 = dma.done [#allocation9], 128
    $region37: #{tpu_custom_call.1} parent=1 // pred_fallthru
      _
    %86 = vsyncpa [#allocation3], 1
    %87 = vsyncpa [#allocation6], 1
    %88 = vsyncpa [#allocation4], 1
    %89 = vsyncpa [#allocation9], 1

</llo_original>
